<compile_context>
chip_gen: v6e
topology: v6e:2x2x1
jax: 0.10.0
libtpu: 0.0.40
codegen_flags: <defaults>
</compile_context>

<pallas_src>
from functools import partial

import jax
import jax.numpy as jnp
from jax.experimental import pallas as pl
from jax.experimental.pallas import tpu as pltpu


def _round_up(x: int, m: int) -> int:
    return ((x + m - 1) // m) * m


def _actor_head_kernel(z_ref, w_ref, b_ref, out_ref, *, n_act: int, a_padded: int):
    # MXU matmul with f32 accumulation (operands may be f32 or bf16).
    logits = jnp.dot(z_ref[...], w_ref[...], preferred_element_type=jnp.float32)
    logits = logits + b_ref[...].astype(jnp.float32)  # (1, Ap) broadcast over (tb, Ap)

    if n_act == a_padded:
        valid = None
    else:
        # Mask the padded action lanes so they cannot affect max / sum.
        lane = jax.lax.broadcasted_iota(jnp.int32, logits.shape, dimension=1)
        valid = lane < n_act
        logits = jnp.where(valid, logits, jnp.float32(-1e30))

    # Categorical(logits=...) normalization: logits - logsumexp(logits, -1)
    m = jnp.max(logits, axis=-1, keepdims=True)
    e = jnp.exp(logits - m)
    if valid is not None:
        e = jnp.where(valid, e, jnp.float32(0.0))
    lse = m + jnp.log(jnp.sum(e, axis=-1, keepdims=True))
    out_ref[...] = (logits - lse).astype(out_ref.dtype)


def actor_head(z, w, b, *, block_b: int = 512, use_bf16_matmul: bool = False):
    """z: (B, enc_dim) f32, w: (enc_dim, A) f32, b: (A,) f32 -> (B, A) log-probs."""
    B, D = z.shape
    A = w.shape[1]

    # Lane-dense padding: last dims to multiples of 128, batch to sublane/tile multiple.
    Dp = _round_up(D, 128)
    Ap = _round_up(A, 128)
    tb = min(_round_up(block_b, 8), _round_up(B, 8))  # batch tile (sublane multiple)
    Bp = _round_up(B, tb)

    zp = jnp.pad(z, ((0, Bp - B), (0, Dp - D)))          # zero rows/cols are inert
    wp = jnp.pad(w, ((0, Dp - D), (0, Ap - A)))          # zero K/A pads are inert
    bp = jnp.pad(b.reshape(1, A), ((0, 0), (0, Ap - A)))  # pad lanes masked in-kernel

    if use_bf16_matmul:
        # bf16 MXU operands (v6e/v7x); accumulation stays f32 in the kernel.
        zp = zp.astype(jnp.bfloat16)
        wp = wp.astype(jnp.bfloat16)

    kernel = partial(_actor_head_kernel, n_act=A, a_padded=Ap)

    out = pl.pallas_call(
        kernel,
        out_shape=jax.ShapeDtypeStruct((Bp, Ap), jnp.float32),
        grid=(Bp // tb,),
        in_specs=[
            pl.BlockSpec((tb, Dp), lambda i: (i, 0)),   # z: batch-tiled, pipelined
            pl.BlockSpec((Dp, Ap), lambda i: (0, 0)),   # w: resident across grid
            pl.BlockSpec((1, Ap), lambda i: (0, 0)),    # b: resident across grid
        ],
        out_specs=pl.BlockSpec((tb, Ap), lambda i: (i, 0)),
        compiler_params=pltpu.CompilerParams(
            dimension_semantics=("parallel",),  # megacore-shards batch tiles on v7x
        ),
    )(zp, wp, bp)

    return out[:B, :A]


if __name__ == "__main__":
    # Small shapes consistent with the module: batch=8, enc_dim=32, 6 discrete actions
    B, ENC_DIM, N_ACT = 8, 32, 6

    key = jax.random.PRNGKey(0)
    kz, kw, kb = jax.random.split(key, 3)

    # Deterministic parameter init mirroring nn.Linear's uniform(-1/sqrt(in), 1/sqrt(in))
    bound = 1.0 / jnp.sqrt(jnp.float32(ENC_DIM))
    w = jax.random.uniform(kw, (ENC_DIM, N_ACT), jnp.float32, -bound, bound)
    b = jax.random.uniform(kb, (N_ACT,), jnp.float32, -bound, bound)
    z = jax.random.normal(kz, (B, ENC_DIM), jnp.float32)

    out = actor_head(z, w, b)
    out = jax.block_until_ready(out)

    # Reference check (plain JAX): linear + log_softmax (Categorical normalization)
    ref = jax.nn.log_softmax(z @ w + b, axis=-1)
    assert out.shape == (B, N_ACT)
    assert jnp.allclose(out, ref, atol=1e-5, rtol=1e-5)

    print("KERNEL_OK")
</pallas_src>

<mosaic_0001>
module attributes {stable_mosaic.version = 11 : i64} {
  func.func @_actor_head_kernel(%arg0: i32, %arg1: memref<8x128xf32, #tpu.memory_space<vmem>>, %arg2: memref<128x128xf32, #tpu.memory_space<vmem>>, %arg3: memref<1x128xf32, #tpu.memory_space<vmem>>, %arg4: memref<8x128xf32, #tpu.memory_space<vmem>>) attributes {dimension_semantics = [#tpu.dimension_semantics<parallel>], iteration_bounds = array<i64: 1>, scalar_prefetch = 0 : i64, scratch_operands = 0 : i64, tpu.core_type = #tpu.core_type<tc>, window_params = [{transform_indices = @transform_0, window_bounds = array<i64: 8, 128>}, {pipeline_mode = #tpu.pipeline_mode<synchronous>, transform_indices = @transform_1, window_bounds = array<i64: 128, 128>}, {pipeline_mode = #tpu.pipeline_mode<synchronous>, transform_indices = @transform_2, window_bounds = array<i64: 1, 128>}, {transform_indices = @transform_3, window_bounds = array<i64: 8, 128>}]} {
    %c0 = arith.constant 0 : index
    %c0_0 = arith.constant 0 : index
    %0 = vector.load %arg1[%c0, %c0_0] : memref<8x128xf32, #tpu.memory_space<vmem>>, vector<8x128xf32>
    %c0_1 = arith.constant 0 : index
    %c0_2 = arith.constant 0 : index
    %1 = vector.load %arg2[%c0_1, %c0_2] : memref<128x128xf32, #tpu.memory_space<vmem>>, vector<128x128xf32>
    %cst = arith.constant dense<0.000000e+00> : vector<8x128xf32>
    %2 = tpu.matmul %0, %1, %cst {dimension_numbers = #tpu.dot_dimension_numbers<[1], [0], [0], [1], [0, 0, 1, 1], [], []>} : vector<8x128xf32>, vector<128x128xf32>, vector<8x128xf32> -> vector<8x128xf32>
    %c0_3 = arith.constant 0 : index
    %c0_4 = arith.constant 0 : index
    %3 = vector.load %arg3[%c0_3, %c0_4] : memref<1x128xf32, #tpu.memory_space<vmem>>, vector<1x128xf32>
    %4 = vector.broadcast %3 : vector<1x128xf32> to vector<8x128xf32>
    %5 = arith.addf %2, %4 : vector<8x128xf32>
    %6 = tpu.iota {dimensions = array<i32: 1>} : vector<8x128xi32>
    %c6_i32 = arith.constant 6 : i32
    %7 = vector.broadcast %c6_i32 : i32 to vector<8x128xi32>
    %8 = arith.cmpi slt, %6, %7 : vector<8x128xi32>
    %cst_5 = arith.constant -1.000000e+30 : f32
    %9 = vector.broadcast %cst_5 : f32 to vector<8x128xf32>
    %10 = arith.select %8, %5, %9 : vector<8x128xi1>, vector<8x128xf32>
    %cst_6 = arith.constant dense<0xFF800000> : vector<8xf32>
    %11 = vector.multi_reduction <maximumf>, %10, %cst_6 [1] : vector<8x128xf32> to vector<8xf32>
    %12 = vector.shape_cast %11 : vector<8xf32> to vector<8x1xf32>
    %13 = vector.broadcast %12 : vector<8x1xf32> to vector<8x128xf32>
    %14 = arith.subf %10, %13 : vector<8x128xf32>
    %15 = math.exp %14 : vector<8x128xf32>
    %cst_7 = arith.constant 0.000000e+00 : f32
    %16 = vector.broadcast %cst_7 : f32 to vector<8x128xf32>
    %17 = arith.select %8, %15, %16 : vector<8x128xi1>, vector<8x128xf32>
    %cst_8 = arith.constant dense<0.000000e+00> : vector<8xf32>
    %18 = vector.multi_reduction <add>, %17, %cst_8 [1] : vector<8x128xf32> to vector<8xf32>
    %19 = vector.shape_cast %18 : vector<8xf32> to vector<8x1xf32>
    %20 = math.log %19 : vector<8x1xf32>
    %21 = arith.addf %12, %20 : vector<8x1xf32>
    %22 = vector.broadcast %21 : vector<8x1xf32> to vector<8x128xf32>
    %23 = arith.subf %10, %22 : vector<8x128xf32>
    %c0_9 = arith.constant 0 : index
    %c0_10 = arith.constant 0 : index
    %24 = vector.load %arg4[%c0_9, %c0_10] : memref<8x128xf32, #tpu.memory_space<vmem>>, vector<8x128xf32>
    tpu.vector_store %arg4[%c0_9, %c0_10], %23 {strides = array<i32>} : memref<8x128xf32, #tpu.memory_space<vmem>>, vector<8x128xf32>,
    return
  }
  func.func @transform_0(%arg0: i32) -> (i32, i32) {
    %c0_i32 = arith.constant 0 : i32
    %c0_i32_0 = arith.constant 0 : i32
    return %arg0, %c0_i32 : i32, i32
  }
  func.func @transform_1(%arg0: i32) -> (i32, i32) {
    %c0_i32 = arith.constant 0 : i32
    %c0_i32_0 = arith.constant 0 : i32
    %c0_i32_1 = arith.constant 0 : i32
    return %c0_i32, %c0_i32_0 : i32, i32
  }
  func.func @transform_2(%arg0: i32) -> (i32, i32) {
    %c0_i32 = arith.constant 0 : i32
    %c0_i32_0 = arith.constant 0 : i32
    %c0_i32_1 = arith.constant 0 : i32
    return %c0_i32, %c0_i32_0 : i32, i32
  }
  func.func @transform_3(%arg0: i32) -> (i32, i32) {
    %c0_i32 = arith.constant 0 : i32
    %c0_i32_0 = arith.constant 0 : i32
    return %arg0, %c0_i32 : i32, i32
  }
}

</mosaic_0001>

<llo_original>
// kernel: tpu_custom_call.1
$region0: #{tpu_custom_call.1}
  #allocation0 [shape = 'u32[]', space=smem, size = 0x4, offset = 0x4, fixed_abs, tag = 'smem constant byte address 0x4 - core index']
  #allocation1 [shape = 'u32[144,128]{1,0:T(1,128)}', space=vmem, size = 0x12000, scoped, tag = 'internal scratch']
  %s0 = inlined_call_operand.hbm [shape: f32[8,128], index: 0, kind: input, shape index: {}]
  %s1 = inlined_call_operand.hbm [shape: f32[128,128], index: 1, kind: input, shape index: {}]
  %s2 = inlined_call_operand.vmem [shape: f32[1,128], index: 2, kind: input, shape index: {}]
  %s3 = inlined_call_operand.hbm [shape: f32[8,128], index: 3, kind: output, shape index: {}]
  %s4 = sld [smem:[#allocation0]]
  $region30: #{tpu_custom_call.1} parent=0
    _
  %s6 = ssub.s32 1, %s4
  %s7 = scalar_select 0, %s6, %s4
  $region1: #{tpu_custom_call.1} parent=0
    #allocation2 [shape = 'u8[4096]{0}', space=vmem, size = 0x1000, scoped, tag = 'input window, operand 0, single buffered']
    #allocation3 [shape = 's32[1]{0}', space=sflag, size = 0x4, scoped, tag = 'scoped memory for tpu_custom_call.1']
    #allocation4 [shape = 's32[1]{0}', space=sflag, size = 0x4, scoped, tag = 'scoped memory for tpu_custom_call.1']
    #allocation5 [shape = 'u8[65536]{0}', space=vmem, size = 0x10000, scoped, tag = 'input window, operand 1, single buffered']
    #allocation6 [shape = 's32[1]{0}', space=sflag, size = 0x4, scoped, tag = 'scoped memory for tpu_custom_call.1']
    #allocation7 [shape = 'u8[4096]{0}', space=vmem, size = 0x1000, scoped, tag = 'output window, operand 0, single buffered']
    %8 = vsyncpa [#allocation3], 0
    %9 = vsyncpa [#allocation6], 0
    %10 = vsyncpa [#allocation4], 0
    // Predicated region
    $region2: #{tpu_custom_call.1} parent=1 // pred_check
      _
    $region3: #{tpu_custom_call.1} parent=1 // pred_check_branch
      %12 = sbr.rel (0) target = $region5
    $region4: #{tpu_custom_call.1} parent=1 // pred_region
      %s14 = ssub.s32 128, 128
      %15 = vsyncadd [#allocation3], %s14
      %s17 = sshll.u32 [#allocation2], 4
      %s18 = int_to_ptr.vmem [resolvable:$true] %s17
      %20 = dma.hbm_to_vmem [thread:$0]  %s0, 128, %s18, [#allocation3]
    $region5: #{tpu_custom_call.1} parent=1 // pred_fallthru
      _
    // Predicated region
    $region6: #{tpu_custom_call.1} parent=1 // pred_check
      _
    $region7: #{tpu_custom_call.1} parent=1 // pred_check_branch
      %22 = sbr.rel (0) target = $region9
    $region8: #{tpu_custom_call.1} parent=1 // pred_region
      %s24 = ssub.s32 2048, 2048
      %25 = vsyncadd [#allocation6], %s24
      %s26 = sshll.u32 [#allocation5], 4
      %s27 = int_to_ptr.vmem [resolvable:$true] %s26
      %32 = dma.hbm_to_vmem [thread:$0]  %s1, 2048, %s27, [#allocation6], 128, 128, 8
    $region9: #{tpu_custom_call.1} parent=1 // pred_fallthru
      _
    // Predicated region
    $region10: #{tpu_custom_call.1} parent=1 // pred_check
      _
    $region11: #{tpu_custom_call.1} parent=1 // pred_check_branch
      %34 = sbr.rel (0) target = $region13
    $region12: #{tpu_custom_call.1} parent=1 // pred_region
      _
    $region13: #{tpu_custom_call.1} parent=1 // pred_fallthru
      _
    // Predicated region
    $region14: #{tpu_custom_call.1} parent=1 // pred_check
      _
    $region15: #{tpu_custom_call.1} parent=1 // pred_check_branch
      %36 = sbr.rel (0) target = $region17
    $region16: #{tpu_custom_call.1} parent=1 // pred_region
      %37 = dma.done [#allocation3], 128
    $region17: #{tpu_custom_call.1} parent=1 // pred_fallthru
      _
    // Predicated region
    $region18: #{tpu_custom_call.1} parent=1 // pred_check
      _
    $region19: #{tpu_custom_call.1} parent=1 // pred_check_branch
      %39 = sbr.rel (0) target = $region21
    $region20: #{tpu_custom_call.1} parent=1 // pred_region
      %40 = dma.done [#allocation6], 2048
    $region21: #{tpu_custom_call.1} parent=1 // pred_fallthru
      _
    %v41 = vld [vmem:[#allocation2] sm:$0xff]
    %v42 = vld [vmem:[#allocation5] sm:$0xff]
    %v43 = vld [vmem:[#allocation5 + $0x8] sm:$0xff]
    %v44 = vld [vmem:[#allocation5 + $0x10] sm:$0xff]
    %v45 = vld [vmem:[#allocation5 + $0x18] sm:$0xff]
    %v46 = vld [vmem:[#allocation5 + $0x20] sm:$0xff]
    %v47 = vld [vmem:[#allocation5 + $0x28] sm:$0xff]
    %v48 = vld [vmem:[#allocation5 + $0x30] sm:$0xff]
    %v49 = vld [vmem:[#allocation5 + $0x38] sm:$0xff]
    %v50 = vld [vmem:[#allocation5 + $0x40] sm:$0xff]
    %v51 = vld [vmem:[#allocation5 + $0x48] sm:$0xff]
    %v52 = vld [vmem:[#allocation5 + $0x50] sm:$0xff]
    %v53 = vld [vmem:[#allocation5 + $0x58] sm:$0xff]
    %v54 = vld [vmem:[#allocation5 + $0x60] sm:$0xff]
    %v55 = vld [vmem:[#allocation5 + $0x68] sm:$0xff]
    %v56 = vld [vmem:[#allocation5 + $0x70] sm:$0xff]
    %v57 = vld [vmem:[#allocation5 + $0x78] sm:$0xff]
    %v58 = vld [vmem:[%s2] sm:$0x1]
    %v60 = vlaneseq
    %v61 = vshrl.u32 %v60, 7
    %v62 = vsub.s32 0, %v61
    %v63 = vrot.slane %v58, %v62
    %65 = vmatprep.subr.mxu0 0.0
    %66 = vmatpush1.msra.mxu0 %v57
    %67 = vmatprep.subr.mxu0 0.0
    %68 = vmatpush1.msra.mxu0 %v56
    %69 = vmatprep.subr.mxu0 0.0
    %70 = vmatpush1.msra.mxu0 %v55
    %71 = vmatprep.subr.mxu0 0.0
    %72 = vmatpush1.msra.mxu0 %v54
    %73 = vmatprep.subr.mxu0 0.0
    %74 = vmatpush1.msra.mxu0 %v53
    %75 = vmatprep.subr.mxu0 0.0
    %76 = vmatpush1.msra.mxu0 %v52
    %77 = vmatprep.subr.mxu0 0.0
    %78 = vmatpush1.msra.mxu0 %v51
    %79 = vmatprep.subr.mxu0 0.0
    %80 = vmatpush1.msra.mxu0 %v50
    %81 = vmatprep.subr.mxu0 0.0
    %82 = vmatpush1.msra.mxu0 %v49
    %83 = vmatprep.subr.mxu0 0.0
    %84 = vmatpush1.msra.mxu0 %v48
    %85 = vmatprep.subr.mxu0 0.0
    %86 = vmatpush1.msra.mxu0 %v47
    %87 = vmatprep.subr.mxu0 0.0
    %88 = vmatpush1.msra.mxu0 %v46
    %89 = vmatprep.subr.mxu0 0.0
    %90 = vmatpush1.msra.mxu0 %v45
    %91 = vmatprep.subr.mxu0 0.0
    %92 = vmatpush1.msra.mxu0 %v44
    %93 = vmatprep.subr.mxu0 0.0
    %94 = vmatpush1.msra.mxu0 %v43
    %95 = vmatprep.subr.mxu0 0.0
    %96 = vmatpush1.msra.mxu0 %v42
    %97 = vmatprep.subr.mxu0 0.0
    %98 = vmatpush2.msra.mxu0 0.0
    %99 = vmatprep.subr.mxu0 0.0
    %100 = vmatpush2.msra.mxu0 0.0
    %101 = vmatprep.subr.mxu0 0.0
    %102 = vmatpush2.msra.mxu0 0.0
    %103 = vmatprep.subr.mxu0 0.0
    %104 = vmatpush2.msra.mxu0 0.0
    %105 = vmatprep.subr.mxu0 0.0
    %106 = vmatpush2.msra.mxu0 0.0
    %107 = vmatprep.subr.mxu0 0.0
    %108 = vmatpush2.msra.mxu0 0.0
    %109 = vmatprep.subr.mxu0 0.0
    %110 = vmatpush2.msra.mxu0 0.0
    %111 = vmatprep.subr.mxu0 0.0
    %112 = vmatpush2.msra.mxu0 0.0
    %113 = vmatprep.subr.mxu0 0.0
    %114 = vmatpush2.msra.mxu0 0.0
    %115 = vmatprep.subr.mxu0 0.0
    %116 = vmatpush2.msra.mxu0 0.0
    %117 = vmatprep.subr.mxu0 0.0
    %118 = vmatpush2.msra.mxu0 0.0
    %119 = vmatprep.subr.mxu0 0.0
    %120 = vmatpush2.msra.mxu0 0.0
    %121 = vmatprep.subr.mxu0 0.0
    %122 = vmatpush2.msra.mxu0 0.0
    %123 = vmatprep.subr.mxu0 0.0
    %124 = vmatpush2.msra.mxu0 0.0
    %125 = vmatprep.subr.mxu0 0.0
    %126 = vmatpush2.msra.mxu0 0.0
    %127 = vmatprep.subr.mxu0 0.0
    %128 = vmatpush2.msra.mxu0 0.0
    %129 = vmatprep.mubr.f32.mxu0 0.0
    %130 = vmatmul.mubr.f32.gmra.mxu0 %v41
    %v131 = vpop.f32.mrf.mxu0
    %v132 = vadd.f32 %v63, %v131
    %v133 = vpop.f32.mrf.mxu0
    %134 = vdwg.mxu0
    %v135 = vlaneseq
    %v136 = vand.u32 %v135, 127
    %vm137 = vcmp.lt.s32.totalorder %v136, 6
    %v138 = vsel %vm137, %v132, -1e+30
    %139 = vmax.xlane.f32.xlu0 %v138
    %v140 = vpop.xlane.xlu0 %139
    %v141 = vsub.f32 %v138, %v140
    %v142 = vmul.f32 %v141, 1.442695
    %v143 = vpow.pop %v142
    %v144 = vsel %vm137, %v143, 0.0
    %145 = vadd.xlane.f32.xlu0 %v144
    %v146 = vpop.xlane.xlu0 %145
    %v147 = vlog2.pop %v146
    %v148 = vmul.f32 %v147, 0.6931472
    %v149 = vadd.f32 %v140, %v148
    %v150 = vsub.f32 %v138, %v149
    %151 = vst [vmem:[#allocation7] sm:$0xff] %v150
    // Predicated region
    $region22: #{tpu_custom_call.1} parent=1 // pred_check
      _
    $region23: #{tpu_custom_call.1} parent=1 // pred_check_branch
      %153 = sbr.rel (0) target = $region25
    $region24: #{tpu_custom_call.1} parent=1 // pred_region
      %s155 = ssub.s32 128, 128
      %156 = vsyncadd [#allocation4], %s155
      %s158 = sshll.u32 [#allocation7], 4
      %s159 = int_to_ptr.vmem [resolvable:$true] %s158
      %161 = dma.vmem_to_hbm [thread:$0]  %s159, 128, %s3, [#allocation4]
    $region25: #{tpu_custom_call.1} parent=1 // pred_fallthru
      _
    // Predicated region
    $region26: #{tpu_custom_call.1} parent=1 // pred_check
      _
    $region27: #{tpu_custom_call.1} parent=1 // pred_check_branch
      %163 = sbr.rel (0) target = $region29
    $region28: #{tpu_custom_call.1} parent=1 // pred_region
      %164 = dma.done [#allocation4], 128
    $region29: #{tpu_custom_call.1} parent=1 // pred_fallthru
      _
    %165 = vsyncpa [#allocation3], 1
    %166 = vsyncpa [#allocation6], 1
    %167 = vsyncpa [#allocation4], 1

</llo_original>
